<compile_context>
chip_gen: v6e
topology: v6e:2x2x1
jax: 0.10.0
libtpu: 0.0.40
codegen_flags: <defaults>
</compile_context>

<pallas_src>
import jax
import jax.numpy as jnp
import numpy as np
from jax.experimental import pallas as pl
from jax.experimental.pallas import tpu as pltpu


def _round_up(x: int, m: int) -> int:
    return ((x + m - 1) // m) * m


def state_repr_kernel(w_ref, b_ref, user_ref, items_ref, out_ref):
    """One grid step = TB batch rows.

    w_ref     : (M,)          f32 SMEM  Conv1d weight (1, M, 1) flattened
    b_ref     : (1,)          f32 SMEM  Conv1d bias
    user_ref  : (TB, D)       f32 VMEM  gathered user embedding rows
    items_ref : (TB, M, D)    f32 VMEM  gathered item embedding rows
    out_ref   : (TB, OUT_W)   f32 VMEM  output rows (3*D values + lane pad)
    """
    M = items_ref.shape[1]
    D = user_ref.shape[1]

    user = user_ref[...]                                  # (TB, D)

    # Conv1d(in=M, out=1, k=1): drr = bias + sum_m w[m] * items[:, m, :]
    # Unrolled scalar*vector FMA loop on the VPU; accumulator stays in vregs.
    drr = jnp.full_like(user, b_ref[0])
    for m in range(M):                                    # M is static, small
        drr = drr + w_ref[m] * items_ref[:, m, :]

    pieces = [user, user * drr, drr]                      # torch.cat(..., dim=1)
    pad = out_ref.shape[1] - 3 * D
    if pad:                                               # lane-pad to 128-multiple
        pieces.append(jnp.zeros((user.shape[0], pad), user.dtype))
    out_ref[...] = jnp.concatenate(pieces, axis=1)        # single dense store


def state_repr_forward(user_ids, memory_ids, params):
    """DRR state representation: gather in wrapper, fused compute in Pallas."""
    user_table = params["user_emb"].astype(jnp.float32)   # (user_num, D)
    item_table = params["item_emb"].astype(jnp.float32)   # (item_num+1, D)
    B, M = memory_ids.shape
    D = user_table.shape[1]

    w = params["conv_w"].reshape(M).astype(jnp.float32)       # (M,)
    bias = params["conv_b"].reshape(1).astype(jnp.float32)    # (1,)

    # Batch tile: >=8 rows for sublane-dense tiles, capped to bound vreg use.
    TB = min(64, _round_up(B, 8))
    B_pad = _round_up(B, TB)

    uid = user_ids.astype(jnp.int32)
    mid = memory_ids.astype(jnp.int32)
    if B_pad != B:
        uid = jnp.pad(uid, ((0, B_pad - B),))              # pad with valid id 0
        mid = jnp.pad(mid, ((0, B_pad - B), (0, 0)))

    # One XLA gather per table -> dense, lane/sublane-friendly kernel inputs.
    user_e = jnp.take(user_table, uid, axis=0)             # (B_pad, D)
    item_e = jnp.take(item_table, mid, axis=0)              # (B_pad, M, D)

    out_w = _round_up(3 * D, 128)                           # lane-dense output

    grid_spec = pltpu.PrefetchScalarGridSpec(
        num_scalar_prefetch=0,
        grid=(B_pad // TB,),
        in_specs=[
            pl.BlockSpec(memory_space=pltpu.MemorySpace.SMEM),   # conv weight
            pl.BlockSpec(memory_space=pltpu.MemorySpace.SMEM),   # conv bias
            pl.BlockSpec((TB, D), lambda i: (i, 0)),             # user rows
            pl.BlockSpec((TB, M, D), lambda i: (i, 0, 0)),       # item rows
        ],
        out_specs=pl.BlockSpec((TB, out_w), lambda i: (i, 0)),
    )

    out = pl.pallas_call(
        state_repr_kernel,
        out_shape=jax.ShapeDtypeStruct((B_pad, out_w), jnp.float32),
        grid_spec=grid_spec,
        compiler_params=pltpu.CompilerParams(
            dimension_semantics=("parallel",)),
    )(w, bias, user_e, item_e)

    return out[:B, :3 * D]


def init_params(key, user_num, item_num, embedding_dim, memory_size):
    """Deterministic init matching the PyTorch module's initialize().

    Note: PyTorch zeros the padding row and then re-applies normal_ to the
    whole item table, so the final item table is simply ~N(0, 0.01)."""
    k1, k2, k3 = jax.random.split(key, 3)
    user_emb = 0.01 * jax.random.normal(k1, (user_num, embedding_dim), jnp.float32)
    item_emb = 0.01 * jax.random.normal(k2, (item_num + 1, embedding_dim), jnp.float32)
    conv_w = jax.random.uniform(k3, (1, memory_size, 1), jnp.float32)  # nn.init.uniform_
    conv_b = jnp.zeros((1,), jnp.float32)
    return {"user_emb": user_emb, "item_emb": item_emb,
            "conv_w": conv_w, "conv_b": conv_b}


def reference_forward(user_ids, memory_ids, params):
    """Pure-JAX reference for correctness check."""
    user_emb = jnp.take(params["user_emb"], user_ids, axis=0)
    item_emb = jnp.take(params["item_emb"], memory_ids, axis=0)
    w = params["conv_w"].reshape(-1)                                  # (M,)
    drr = jnp.einsum("bmd,m->bd", item_emb, w) + params["conv_b"][0]
    return jnp.concatenate([user_emb, user_emb * drr, drr], axis=1)


if __name__ == "__main__":
    user_num, item_num = 32, 64
    embedding_dim, memory_size = 32, 8
    batch = 4

    key = jax.random.PRNGKey(0)
    kp, ku, km = jax.random.split(key, 3)
    params = init_params(kp, user_num, item_num, embedding_dim, memory_size)

    user_ids = jax.random.randint(ku, (batch,), 0, user_num, dtype=jnp.int32)
    # memory may contain the padding index `item_num`
    memory_ids = jax.random.randint(km, (batch, memory_size), 0, item_num + 1,
                                    dtype=jnp.int32)

    out = jax.block_until_ready(state_repr_forward(user_ids, memory_ids, params))
    ref = jax.block_until_ready(reference_forward(user_ids, memory_ids, params))

    assert out.shape == (batch, 3 * embedding_dim)
    np.testing.assert_allclose(np.asarray(out), np.asarray(ref), rtol=1e-5, atol=1e-6)

    print("KERNEL_OK")
</pallas_src>

<mosaic_0001>
module attributes {stable_mosaic.version = 11 : i64} {
  func.func @state_repr_kernel(%arg0: i32, %arg1: memref<8xf32, #tpu.memory_space<smem>>, %arg2: memref<1xf32, #tpu.memory_space<smem>>, %arg3: memref<8x32xf32, #tpu.memory_space<vmem>>, %arg4: memref<8x8x32xf32, #tpu.memory_space<vmem>>, %arg5: memref<8x128xf32, #tpu.memory_space<vmem>>) attributes {dimension_semantics = [#tpu.dimension_semantics<parallel>], iteration_bounds = array<i64: 1>, scalar_prefetch = 0 : i64, scratch_operands = 0 : i64, tpu.core_type = #tpu.core_type<tc>, window_params = [{transform_indices = @transform_0, window_bounds = array<i64: 8>}, {transform_indices = @transform_1, window_bounds = array<i64: 1>}, {transform_indices = @transform_2, window_bounds = array<i64: 8, 32>}, {transform_indices = @transform_3, window_bounds = array<i64: 8, 8, 32>}, {transform_indices = @transform_4, window_bounds = array<i64: 8, 128>}]} {
    %c0 = arith.constant 0 : index
    %c0_0 = arith.constant 0 : index
    %0 = vector.load %arg3[%c0, %c0_0] : memref<8x32xf32, #tpu.memory_space<vmem>>, vector<8x32xf32>
    %c0_1 = arith.constant 0 : index
    %1 = memref.load %arg2[%c0_1] : memref<1xf32, #tpu.memory_space<smem>>
    %2 = vector.broadcast %1 : f32 to vector<8x32xf32>
    %c0_2 = arith.constant 0 : index
    %3 = memref.load %arg1[%c0_2] : memref<8xf32, #tpu.memory_space<smem>>
    %c0_3 = arith.constant 0 : index
    %c0_4 = arith.constant 0 : index
    %c0_5 = arith.constant 0 : index
    %4 = vector.load %arg4[%c0_3, %c0_4, %c0_5] : memref<8x8x32xf32, #tpu.memory_space<vmem>>, vector<8x1x32xf32>
    %5 = vector.shape_cast %4 : vector<8x1x32xf32> to vector<8x32xf32>
    %6 = vector.broadcast %3 : f32 to vector<8x32xf32>
    %7 = arith.mulf %6, %5 : vector<8x32xf32>
    %8 = arith.addf %2, %7 : vector<8x32xf32>
    %c1 = arith.constant 1 : index
    %9 = memref.load %arg1[%c1] : memref<8xf32, #tpu.memory_space<smem>>
    %c0_6 = arith.constant 0 : index
    %c1_7 = arith.constant 1 : index
    %c0_8 = arith.constant 0 : index
    %10 = vector.load %arg4[%c0_6, %c1_7, %c0_8] : memref<8x8x32xf32, #tpu.memory_space<vmem>>, vector<8x1x32xf32>
    %11 = vector.shape_cast %10 : vector<8x1x32xf32> to vector<8x32xf32>
    %12 = vector.broadcast %9 : f32 to vector<8x32xf32>
    %13 = arith.mulf %12, %11 : vector<8x32xf32>
    %14 = arith.addf %8, %13 : vector<8x32xf32>
    %c2 = arith.constant 2 : index
    %15 = memref.load %arg1[%c2] : memref<8xf32, #tpu.memory_space<smem>>
    %c0_9 = arith.constant 0 : index
    %c2_10 = arith.constant 2 : index
    %c0_11 = arith.constant 0 : index
    %16 = vector.load %arg4[%c0_9, %c2_10, %c0_11] : memref<8x8x32xf32, #tpu.memory_space<vmem>>, vector<8x1x32xf32>
    %17 = vector.shape_cast %16 : vector<8x1x32xf32> to vector<8x32xf32>
    %18 = vector.broadcast %15 : f32 to vector<8x32xf32>
    %19 = arith.mulf %18, %17 : vector<8x32xf32>
    %20 = arith.addf %14, %19 : vector<8x32xf32>
    %c3 = arith.constant 3 : index
    %21 = memref.load %arg1[%c3] : memref<8xf32, #tpu.memory_space<smem>>
    %c0_12 = arith.constant 0 : index
    %c3_13 = arith.constant 3 : index
    %c0_14 = arith.constant 0 : index
    %22 = vector.load %arg4[%c0_12, %c3_13, %c0_14] : memref<8x8x32xf32, #tpu.memory_space<vmem>>, vector<8x1x32xf32>
    %23 = vector.shape_cast %22 : vector<8x1x32xf32> to vector<8x32xf32>
    %24 = vector.broadcast %21 : f32 to vector<8x32xf32>
    %25 = arith.mulf %24, %23 : vector<8x32xf32>
    %26 = arith.addf %20, %25 : vector<8x32xf32>
    %c4 = arith.constant 4 : index
    %27 = memref.load %arg1[%c4] : memref<8xf32, #tpu.memory_space<smem>>
    %c0_15 = arith.constant 0 : index
    %c4_16 = arith.constant 4 : index
    %c0_17 = arith.constant 0 : index
    %28 = vector.load %arg4[%c0_15, %c4_16, %c0_17] : memref<8x8x32xf32, #tpu.memory_space<vmem>>, vector<8x1x32xf32>
    %29 = vector.shape_cast %28 : vector<8x1x32xf32> to vector<8x32xf32>
    %30 = vector.broadcast %27 : f32 to vector<8x32xf32>
    %31 = arith.mulf %30, %29 : vector<8x32xf32>
    %32 = arith.addf %26, %31 : vector<8x32xf32>
    %c5 = arith.constant 5 : index
    %33 = memref.load %arg1[%c5] : memref<8xf32, #tpu.memory_space<smem>>
    %c0_18 = arith.constant 0 : index
    %c5_19 = arith.constant 5 : index
    %c0_20 = arith.constant 0 : index
    %34 = vector.load %arg4[%c0_18, %c5_19, %c0_20] : memref<8x8x32xf32, #tpu.memory_space<vmem>>, vector<8x1x32xf32>
    %35 = vector.shape_cast %34 : vector<8x1x32xf32> to vector<8x32xf32>
    %36 = vector.broadcast %33 : f32 to vector<8x32xf32>
    %37 = arith.mulf %36, %35 : vector<8x32xf32>
    %38 = arith.addf %32, %37 : vector<8x32xf32>
    %c6 = arith.constant 6 : index
    %39 = memref.load %arg1[%c6] : memref<8xf32, #tpu.memory_space<smem>>
    %c0_21 = arith.constant 0 : index
    %c6_22 = arith.constant 6 : index
    %c0_23 = arith.constant 0 : index
    %40 = vector.load %arg4[%c0_21, %c6_22, %c0_23] : memref<8x8x32xf32, #tpu.memory_space<vmem>>, vector<8x1x32xf32>
    %41 = vector.shape_cast %40 : vector<8x1x32xf32> to vector<8x32xf32>
    %42 = vector.broadcast %39 : f32 to vector<8x32xf32>
    %43 = arith.mulf %42, %41 : vector<8x32xf32>
    %44 = arith.addf %38, %43 : vector<8x32xf32>
    %c7 = arith.constant 7 : index
    %45 = memref.load %arg1[%c7] : memref<8xf32, #tpu.memory_space<smem>>
    %c0_24 = arith.constant 0 : index
    %c7_25 = arith.constant 7 : index
    %c0_26 = arith.constant 0 : index
    %46 = vector.load %arg4[%c0_24, %c7_25, %c0_26] : memref<8x8x32xf32, #tpu.memory_space<vmem>>, vector<8x1x32xf32>
    %47 = vector.shape_cast %46 : vector<8x1x32xf32> to vector<8x32xf32>
    %48 = vector.broadcast %45 : f32 to vector<8x32xf32>
    %49 = arith.mulf %48, %47 : vector<8x32xf32>
    %50 = arith.addf %44, %49 : vector<8x32xf32>
    %51 = arith.mulf %0, %50 : vector<8x32xf32>
    %cst = arith.constant 0.000000e+00 : f32
    %52 = vector.broadcast %cst : f32 to vector<8x32xf32>
    %53 = tpu.concatenate %0, %51, %50, %52 in 1 : vector<8x32xf32>, vector<8x32xf32>, vector<8x32xf32>, vector<8x32xf32> -> vector<8x128xf32>
    %c0_27 = arith.constant 0 : index
    %c0_28 = arith.constant 0 : index
    %54 = vector.load %arg5[%c0_27, %c0_28] : memref<8x128xf32, #tpu.memory_space<vmem>>, vector<8x128xf32>
    tpu.vector_store %arg5[%c0_27, %c0_28], %53 {strides = array<i32>} : memref<8x128xf32, #tpu.memory_space<vmem>>, vector<8x128xf32>,
    return
  }
  func.func @transform_0(%arg0: i32) -> i32 {
    %c0_i32 = arith.constant 0 : i32
    %c0_i32_0 = arith.constant 0 : i32
    return %c0_i32 : i32
  }
  func.func @transform_1(%arg0: i32) -> i32 {
    %c0_i32 = arith.constant 0 : i32
    %c0_i32_0 = arith.constant 0 : i32
    return %c0_i32 : i32
  }
  func.func @transform_2(%arg0: i32) -> (i32, i32) {
    %c0_i32 = arith.constant 0 : i32
    %c0_i32_0 = arith.constant 0 : i32
    return %arg0, %c0_i32 : i32, i32
  }
  func.func @transform_3(%arg0: i32) -> (i32, i32, i32) {
    %c0_i32 = arith.constant 0 : i32
    %c0_i32_0 = arith.constant 0 : i32
    %c0_i32_1 = arith.constant 0 : i32
    return %arg0, %c0_i32, %c0_i32_0 : i32, i32, i32
  }
  func.func @transform_4(%arg0: i32) -> (i32, i32) {
    %c0_i32 = arith.constant 0 : i32
    %c0_i32_0 = arith.constant 0 : i32
    return %arg0, %c0_i32 : i32, i32
  }
}

</mosaic_0001>

<llo_original>
// kernel: tpu_custom_call.1
$region0: #{tpu_custom_call.1}
  #allocation0 [shape = 'u32[]', space=smem, size = 0x4, offset = 0x4, fixed_abs, tag = 'smem constant byte address 0x4 - core index']
  #allocation1 [shape = 'u32[144,128]{1,0:T(1,128)}', space=vmem, size = 0x12000, scoped, tag = 'internal scratch']
  #allocation2 [shape = 'f32[1]{0:T(128)S(6)}', space=smem, size = 0x200, scoped, tag = 'scoped memory for tpu_custom_call.1']
  %s0 = inlined_call_operand.vmem [shape: f32[8], index: 0, kind: input, shape index: {}]
  %s1 = inlined_call_operand.<no memory space> [shape: f32[1], index: 1, kind: input, shape index: {}]
  %s2 = inlined_call_operand.hbm [shape: f32[8,32], index: 2, kind: input, shape index: {}]
  %s3 = inlined_call_operand.hbm [shape: f32[8,8,32], index: 3, kind: input, shape index: {}]
  %s4 = inlined_call_operand.hbm [shape: f32[8,128], index: 4, kind: output, shape index: {}]
  %s5 = sld [smem:[#allocation0]]
  $region38: #{tpu_custom_call.1} parent=0
    _
  %s7 = ssub.s32 1, %s5
  %s8 = scalar_select 0, %s7, %s5
  %9 = sst [smem:[#allocation2]] %s1
  $region1: #{tpu_custom_call.1} parent=0
    #allocation3 [shape = 'u8[512]{0}', space=smem, size = 0x200, scoped, tag = 'input window, operand 0, single buffered']
    #allocation4 [shape = 's32[1]{0}', space=sflag, size = 0x4, scoped, tag = 'scoped memory for tpu_custom_call.1']
    #allocation5 [shape = 's32[1]{0}', space=sflag, size = 0x4, scoped, tag = 'scoped memory for tpu_custom_call.1']
    #allocation6 [shape = 's32[1]{0}', space=sflag, size = 0x4, scoped, tag = 'scoped memory for tpu_custom_call.1']
    #allocation7 [shape = 'u8[4096]{0}', space=vmem, size = 0x1000, scoped, tag = 'input window, operand 2, single buffered']
    #allocation8 [shape = 'u8[32768]{0}', space=vmem, size = 0x8000, scoped, tag = 'input window, operand 3, single buffered']
    #allocation9 [shape = 's32[1]{0}', space=sflag, size = 0x4, scoped, tag = 'scoped memory for tpu_custom_call.1']
    #allocation10 [shape = 'u8[4096]{0}', space=vmem, size = 0x1000, scoped, tag = 'output window, operand 0, single buffered']
    %10 = vsyncpa [#allocation6], 0
    %11 = vsyncpa [#allocation4], 0
    %12 = vsyncpa [#allocation9], 0
    %13 = vsyncpa [#allocation5], 0
    // Predicated region
    $region2: #{tpu_custom_call.1} parent=1 // pred_check
      _
    $region3: #{tpu_custom_call.1} parent=1 // pred_check_branch
      %15 = sbr.rel (0) target = $region5
    $region4: #{tpu_custom_call.1} parent=1 // pred_region
      %s17 = ssub.s32 16, 16
      %18 = vsyncadd [#allocation6], %s17
      %s20 = sshll.u32 %s0, 4
      %s21 = int_to_ptr.vmem [resolvable:$true] %s20
      %23 = dma.vmem_to_smem %s21, 16, [#allocation3], [#allocation6]
    $region5: #{tpu_custom_call.1} parent=1 // pred_fallthru
      _
    // Predicated region
    $region6: #{tpu_custom_call.1} parent=1 // pred_check
      _
    $region7: #{tpu_custom_call.1} parent=1 // pred_check_branch
      %25 = sbr.rel (0) target = $region9
    $region8: #{tpu_custom_call.1} parent=1 // pred_region
      _
    $region9: #{tpu_custom_call.1} parent=1 // pred_fallthru
      _
    // Predicated region
    $region10: #{tpu_custom_call.1} parent=1 // pred_check
      _
    $region11: #{tpu_custom_call.1} parent=1 // pred_check_branch
      %27 = sbr.rel (0) target = $region13
    $region12: #{tpu_custom_call.1} parent=1 // pred_region
      %s29 = ssub.s32 128, 128
      %30 = vsyncadd [#allocation4], %s29
      %s32 = sshll.u32 [#allocation7], 4
      %s33 = int_to_ptr.vmem [resolvable:$true] %s32
      %35 = dma.hbm_to_vmem [thread:$0]  %s2, 128, %s33, [#allocation4]
    $region13: #{tpu_custom_call.1} parent=1 // pred_fallthru
      _
    // Predicated region
    $region14: #{tpu_custom_call.1} parent=1 // pred_check
      _
    $region15: #{tpu_custom_call.1} parent=1 // pred_check_branch
      %37 = sbr.rel (0) target = $region17
    $region16: #{tpu_custom_call.1} parent=1 // pred_region
      %s39 = ssub.s32 1024, 1024
      %40 = vsyncadd [#allocation9], %s39
      %s41 = sshll.u32 [#allocation8], 4
      %s42 = int_to_ptr.vmem [resolvable:$true] %s41
      %47 = dma.hbm_to_vmem [thread:$0]  %s3, 1024, %s42, [#allocation9], 128, 128, 8
    $region17: #{tpu_custom_call.1} parent=1 // pred_fallthru
      _
    // Predicated region
    $region18: #{tpu_custom_call.1} parent=1 // pred_check
      _
    $region19: #{tpu_custom_call.1} parent=1 // pred_check_branch
      %49 = sbr.rel (0) target = $region21
    $region20: #{tpu_custom_call.1} parent=1 // pred_region
      %50 = dma.done [#allocation6], 16
    $region21: #{tpu_custom_call.1} parent=1 // pred_fallthru
      _
    // Predicated region
    $region22: #{tpu_custom_call.1} parent=1 // pred_check
      _
    $region23: #{tpu_custom_call.1} parent=1 // pred_check_branch
      %52 = sbr.rel (0) target = $region25
    $region24: #{tpu_custom_call.1} parent=1 // pred_region
      %53 = dma.done [#allocation4], 128
    $region25: #{tpu_custom_call.1} parent=1 // pred_fallthru
      _
    // Predicated region
    $region26: #{tpu_custom_call.1} parent=1 // pred_check
      _
    $region27: #{tpu_custom_call.1} parent=1 // pred_check_branch
      %55 = sbr.rel (0) target = $region29
    $region28: #{tpu_custom_call.1} parent=1 // pred_region
      %56 = dma.done [#allocation9], 1024
    $region29: #{tpu_custom_call.1} parent=1 // pred_fallthru
      _
    %57 = sfence
    %v58 = vld [vmem:[#allocation7] sm:$0xff]
    %s59 = sld [smem:[#allocation2]]
    %v60 = vstv %s59
    %s61 = sld [smem:[#allocation3]]
    %v62 = vld [vmem:[#allocation8] sm:$0x1]
    %v63 = vld [vmem:[#allocation8 + $0x8] sm:$0x1]
    %v64 = vld [vmem:[#allocation8 + $0x10] sm:$0x1]
    %v65 = vld [vmem:[#allocation8 + $0x18] sm:$0x1]
    %v66 = vld [vmem:[#allocation8 + $0x20] sm:$0x1]
    %v67 = vld [vmem:[#allocation8 + $0x28] sm:$0x1]
    %v68 = vld [vmem:[#allocation8 + $0x30] sm:$0x1]
    %v69 = vld [vmem:[#allocation8 + $0x38] sm:$0x1]
    %v70 = vstv %s61
    %v71 = vmul.f32 %v70, %v62
    %v72 = vmul.f32 %v70, %v63
    %v73 = vmul.f32 %v70, %v64
    %v74 = vmul.f32 %v70, %v65
    %v75 = vmul.f32 %v70, %v66
    %v76 = vmul.f32 %v70, %v67
    %v77 = vmul.f32 %v70, %v68
    %v78 = vmul.f32 %v70, %v69
    %v79 = vadd.f32 %v60, %v71
    %v80 = vadd.f32 %v60, %v72
    %v81 = vadd.f32 %v60, %v73
    %v82 = vadd.f32 %v60, %v74
    %v83 = vadd.f32 %v60, %v75
    %v84 = vadd.f32 %v60, %v76
    %v85 = vadd.f32 %v60, %v77
    %v86 = vadd.f32 %v60, %v78
    %s87 = sld [smem:[#allocation3 + $0x1]]
    %v88 = vld [vmem:[#allocation8 + $0x1] sm:$0x1]
    %v89 = vld [vmem:[#allocation8 + $0x9] sm:$0x1]
    %v90 = vld [vmem:[#allocation8 + $0x11] sm:$0x1]
    %v91 = vld [vmem:[#allocation8 + $0x19] sm:$0x1]
    %v92 = vld [vmem:[#allocation8 + $0x21] sm:$0x1]
    %v93 = vld [vmem:[#allocation8 + $0x29] sm:$0x1]
    %v94 = vld [vmem:[#allocation8 + $0x31] sm:$0x1]
    %v95 = vld [vmem:[#allocation8 + $0x39] sm:$0x1]
    %v96 = vstv %s87
    %v97 = vmul.f32 %v96, %v88
    %v98 = vmul.f32 %v96, %v89
    %v99 = vmul.f32 %v96, %v90
    %v100 = vmul.f32 %v96, %v91
    %v101 = vmul.f32 %v96, %v92
    %v102 = vmul.f32 %v96, %v93
    %v103 = vmul.f32 %v96, %v94
    %v104 = vmul.f32 %v96, %v95
    %v105 = vadd.f32 %v79, %v97
    %v106 = vadd.f32 %v80, %v98
    %v107 = vadd.f32 %v81, %v99
    %v108 = vadd.f32 %v82, %v100
    %v109 = vadd.f32 %v83, %v101
    %v110 = vadd.f32 %v84, %v102
    %v111 = vadd.f32 %v85, %v103
    %v112 = vadd.f32 %v86, %v104
    %s113 = sld [smem:[#allocation3 + $0x2]]
    %v114 = vld [vmem:[#allocation8 + $0x2] sm:$0x1]
    %v115 = vld [vmem:[#allocation8 + $0xa] sm:$0x1]
    %v116 = vld [vmem:[#allocation8 + $0x12] sm:$0x1]
    %v117 = vld [vmem:[#allocation8 + $0x1a] sm:$0x1]
    %v118 = vld [vmem:[#allocation8 + $0x22] sm:$0x1]
    %v119 = vld [vmem:[#allocation8 + $0x2a] sm:$0x1]
    %v120 = vld [vmem:[#allocation8 + $0x32] sm:$0x1]
    %v121 = vld [vmem:[#allocation8 + $0x3a] sm:$0x1]
    %v122 = vstv %s113
    %v123 = vmul.f32 %v122, %v114
    %v124 = vmul.f32 %v122, %v115
    %v125 = vmul.f32 %v122, %v116
    %v126 = vmul.f32 %v122, %v117
    %v127 = vmul.f32 %v122, %v118
    %v128 = vmul.f32 %v122, %v119
    %v129 = vmul.f32 %v122, %v120
    %v130 = vmul.f32 %v122, %v121
    %v131 = vadd.f32 %v105, %v123
    %v132 = vadd.f32 %v106, %v124
    %v133 = vadd.f32 %v107, %v125
    %v134 = vadd.f32 %v108, %v126
    %v135 = vadd.f32 %v109, %v127
    %v136 = vadd.f32 %v110, %v128
    %v137 = vadd.f32 %v111, %v129
    %v138 = vadd.f32 %v112, %v130
    %s139 = sld [smem:[#allocation3 + $0x3]]
    %v140 = vld [vmem:[#allocation8 + $0x3] sm:$0x1]
    %v141 = vld [vmem:[#allocation8 + $0xb] sm:$0x1]
    %v142 = vld [vmem:[#allocation8 + $0x13] sm:$0x1]
    %v143 = vld [vmem:[#allocation8 + $0x1b] sm:$0x1]
    %v144 = vld [vmem:[#allocation8 + $0x23] sm:$0x1]
    %v145 = vld [vmem:[#allocation8 + $0x2b] sm:$0x1]
    %v146 = vld [vmem:[#allocation8 + $0x33] sm:$0x1]
    %v147 = vld [vmem:[#allocation8 + $0x3b] sm:$0x1]
    %v148 = vstv %s139
    %v149 = vmul.f32 %v148, %v140
    %v150 = vmul.f32 %v148, %v141
    %v151 = vmul.f32 %v148, %v142
    %v152 = vmul.f32 %v148, %v143
    %v153 = vmul.f32 %v148, %v144
    %v154 = vmul.f32 %v148, %v145
    %v155 = vmul.f32 %v148, %v146
    %v156 = vmul.f32 %v148, %v147
    %v157 = vadd.f32 %v131, %v149
    %v158 = vadd.f32 %v132, %v150
    %v159 = vadd.f32 %v133, %v151
    %v160 = vadd.f32 %v134, %v152
    %v161 = vadd.f32 %v135, %v153
    %v162 = vadd.f32 %v136, %v154
    %v163 = vadd.f32 %v137, %v155
    %v164 = vadd.f32 %v138, %v156
    %s165 = sld [smem:[#allocation3 + $0x4]]
    %v166 = vld [vmem:[#allocation8 + $0x4] sm:$0x1]
    %v167 = vld [vmem:[#allocation8 + $0xc] sm:$0x1]
    %v168 = vld [vmem:[#allocation8 + $0x14] sm:$0x1]
    %v169 = vld [vmem:[#allocation8 + $0x1c] sm:$0x1]
    %v170 = vld [vmem:[#allocation8 + $0x24] sm:$0x1]
    %v171 = vld [vmem:[#allocation8 + $0x2c] sm:$0x1]
    %v172 = vld [vmem:[#allocation8 + $0x34] sm:$0x1]
    %v173 = vld [vmem:[#allocation8 + $0x3c] sm:$0x1]
    %v174 = vstv %s165
    %v175 = vmul.f32 %v174, %v166
    %v176 = vmul.f32 %v174, %v167
    %v177 = vmul.f32 %v174, %v168
    %v178 = vmul.f32 %v174, %v169
    %v179 = vmul.f32 %v174, %v170
    %v180 = vmul.f32 %v174, %v171
    %v181 = vmul.f32 %v174, %v172
    %v182 = vmul.f32 %v174, %v173
    %v183 = vadd.f32 %v157, %v175
    %v184 = vadd.f32 %v158, %v176
    %v185 = vadd.f32 %v159, %v177
    %v186 = vadd.f32 %v160, %v178
    %v187 = vadd.f32 %v161, %v179
    %v188 = vadd.f32 %v162, %v180
    %v189 = vadd.f32 %v163, %v181
    %v190 = vadd.f32 %v164, %v182
    %s191 = sld [smem:[#allocation3 + $0x5]]
    %v192 = vld [vmem:[#allocation8 + $0x5] sm:$0x1]
    %v193 = vld [vmem:[#allocation8 + $0xd] sm:$0x1]
    %v194 = vld [vmem:[#allocation8 + $0x15] sm:$0x1]
    %v195 = vld [vmem:[#allocation8 + $0x1d] sm:$0x1]
    %v196 = vld [vmem:[#allocation8 + $0x25] sm:$0x1]
    %v197 = vld [vmem:[#allocation8 + $0x2d] sm:$0x1]
    %v198 = vld [vmem:[#allocation8 + $0x35] sm:$0x1]
    %v199 = vld [vmem:[#allocation8 + $0x3d] sm:$0x1]
    %v200 = vstv %s191
    %v201 = vmul.f32 %v200, %v192
    %v202 = vmul.f32 %v200, %v193
    %v203 = vmul.f32 %v200, %v194
    %v204 = vmul.f32 %v200, %v195
    %v205 = vmul.f32 %v200, %v196
    %v206 = vmul.f32 %v200, %v197
    %v207 = vmul.f32 %v200, %v198
    %v208 = vmul.f32 %v200, %v199
    %v209 = vadd.f32 %v183, %v201
    %v210 = vadd.f32 %v184, %v202
    %v211 = vadd.f32 %v185, %v203
    %v212 = vadd.f32 %v186, %v204
    %v213 = vadd.f32 %v187, %v205
    %v214 = vadd.f32 %v188, %v206
    %v215 = vadd.f32 %v189, %v207
    %v216 = vadd.f32 %v190, %v208
    %s217 = sld [smem:[#allocation3 + $0x6]]
    %v218 = vld [vmem:[#allocation8 + $0x6] sm:$0x1]
    %v219 = vld [vmem:[#allocation8 + $0xe] sm:$0x1]
    %v220 = vld [vmem:[#allocation8 + $0x16] sm:$0x1]
    %v221 = vld [vmem:[#allocation8 + $0x1e] sm:$0x1]
    %v222 = vld [vmem:[#allocation8 + $0x26] sm:$0x1]
    %v223 = vld [vmem:[#allocation8 + $0x2e] sm:$0x1]
    %v224 = vld [vmem:[#allocation8 + $0x36] sm:$0x1]
    %v225 = vld [vmem:[#allocation8 + $0x3e] sm:$0x1]
    %v226 = vstv %s217
    %v227 = vmul.f32 %v226, %v218
    %v228 = vmul.f32 %v226, %v219
    %v229 = vmul.f32 %v226, %v220
    %v230 = vmul.f32 %v226, %v221
    %v231 = vmul.f32 %v226, %v222
    %v232 = vmul.f32 %v226, %v223
    %v233 = vmul.f32 %v226, %v224
    %v234 = vmul.f32 %v226, %v225
    %v235 = vadd.f32 %v209, %v227
    %v236 = vadd.f32 %v210, %v228
    %v237 = vadd.f32 %v211, %v229
    %v238 = vadd.f32 %v212, %v230
    %v239 = vadd.f32 %v213, %v231
    %v240 = vadd.f32 %v214, %v232
    %v241 = vadd.f32 %v215, %v233
    %v242 = vadd.f32 %v216, %v234
    %s243 = sld [smem:[#allocation3 + $0x7]]
    %v244 = vld [vmem:[#allocation8 + $0x7] sm:$0x1]
    %v245 = vld [vmem:[#allocation8 + $0xf] sm:$0x1]
    %v246 = vld [vmem:[#allocation8 + $0x17] sm:$0x1]
    %v247 = vld [vmem:[#allocation8 + $0x1f] sm:$0x1]
    %v248 = vld [vmem:[#allocation8 + $0x27] sm:$0x1]
    %v249 = vld [vmem:[#allocation8 + $0x2f] sm:$0x1]
    %v250 = vld [vmem:[#allocation8 + $0x37] sm:$0x1]
    %v251 = vld [vmem:[#allocation8 + $0x3f] sm:$0x1]
    %v252 = vstv %s243
    %v253 = vmul.f32 %v252, %v244
    %v254 = vmul.f32 %v252, %v245
    %v255 = vmul.f32 %v252, %v246
    %v256 = vmul.f32 %v252, %v247
    %v257 = vmul.f32 %v252, %v248
    %v258 = vmul.f32 %v252, %v249
    %v259 = vmul.f32 %v252, %v250
    %v260 = vmul.f32 %v252, %v251
    %v261 = vadd.f32 %v235, %v253
    %v262 = vadd.f32 %v236, %v254
    %v263 = vadd.f32 %v237, %v255
    %v264 = vadd.f32 %v238, %v256
    %v265 = vadd.f32 %v239, %v257
    %v266 = vadd.f32 %v240, %v258
    %v267 = vadd.f32 %v241, %v259
    %v268 = vadd.f32 %v242, %v260
    %v277 = vrot.slane %v262, 7
    %vm278 = vcmask 1041409
    %v279 = vsel %vm278, %v277, %v261
    %v280 = vrot.slane %v263, 6
    %vm281 = vcmask 1042434
    %v282 = vsel %vm281, %v280, %v279
    %v283 = vrot.slane %v264, 5
    %vm284 = vcmask 1043459
    %v285 = vsel %vm284, %v283, %v282
    %v286 = vrot.slane %v265, 4
    %vm287 = vcmask 1044484
    %v288 = vsel %vm287, %v286, %v285
    %v289 = vrot.slane %v266, 3
    %vm290 = vcmask 1045509
    %v291 = vsel %vm290, %v289, %v288
    %v292 = vrot.slane %v267, 2
    %vm293 = vcmask 1046534
    %v294 = vsel %vm293, %v292, %v291
    %v295 = vrot.slane %v268, 1
    %vm296 = vcmask 1047559
    %v297 = vsel %vm296, %v295, %v294
    %v299 = vmul.f32 %v58, %v297
    %301 = vrot.lane.b32.xlu0 %v299, 32
    %v302 = vpop.permute.xlu0 %301
    %304 = vrot.lane.b32.xlu0 %v297, 64
    %v305 = vpop.permute.xlu0 %304
    %vm307 = vcmask 261120
    %v308 = vsel %vm307, %v58, %v302
    %vm309 = vcmask 523264
    %v310 = vsel %vm309, %v308, %v305
    %vm311 = vcmask 785408
    %v312 = vsel %vm311, %v310, 0.0
    %313 = vst [vmem:[#allocation10] sm:$0xff] %v312
    // Predicated region
    $region30: #{tpu_custom_call.1} parent=1 // pred_check
      _
    $region31: #{tpu_custom_call.1} parent=1 // pred_check_branch
      %315 = sbr.rel (0) target = $region33
    $region32: #{tpu_custom_call.1} parent=1 // pred_region
      %s317 = ssub.s32 128, 128
      %318 = vsyncadd [#allocation5], %s317
      %s320 = sshll.u32 [#allocation10], 4
      %s321 = int_to_ptr.vmem [resolvable:$true] %s320
      %323 = dma.vmem_to_hbm [thread:$0]  %s321, 128, %s4, [#allocation5]
    $region33: #{tpu_custom_call.1} parent=1 // pred_fallthru
      _
    // Predicated region
    $region34: #{tpu_custom_call.1} parent=1 // pred_check
      _
    $region35: #{tpu_custom_call.1} parent=1 // pred_check_branch
      %325 = sbr.rel (0) target = $region37
    $region36: #{tpu_custom_call.1} parent=1 // pred_region
      %326 = dma.done [#allocation5], 128
    $region37: #{tpu_custom_call.1} parent=1 // pred_fallthru
      _
    %327 = vsyncpa [#allocation4], 1
    %328 = vsyncpa [#allocation9], 1
    %329 = vsyncpa [#allocation5], 1
    %330 = vsyncpa [#allocation6], 1

</llo_original>
